<compile_context>
chip_gen: v5e
topology: v5e:2x2
jax: 0.10.0
libtpu: 0.0.40
codegen_flags: <defaults>
</compile_context>

<pallas_src>
import functools

import jax
import jax.numpy as jnp
from jax.experimental import pallas as pl
from jax.experimental.pallas import tpu as pltpu


def _round_up(x, m):
    return (x + m - 1) // m * m


def _f32_only_vector_unit():
    """True on chips without a bf16 VPU/EUP (v5e and older): keep elementwise math f32."""
    try:
        kind = jax.devices()[0].device_kind.lower()
    except Exception:
        return False
    return any(tag in kind for tag in ("v2", "v3", "v4", "v5"))


def _ce_kernel(logits_ref, tgt_ref, out_ref, *, C, bhw, HW, compute_dtype):
    """One (image, pixel-tile) grid step.

    logits_ref: (1, C, bhw)    channels on sublanes, pixels on lanes
    tgt_ref:    (1, 1, bhw)    int32 targets
    out_ref:    (1, 1, 1, 128) f32 per-tile loss sum (scalar broadcast to one lane row)
    """
    x = logits_ref[0]                                  # (C, bhw) in HBM dtype
    if x.dtype != compute_dtype:
        x = x.astype(compute_dtype)                    # e.g. bf16 inputs on v5e -> f32
    tgt = tgt_ref[0]                                   # (1, bhw) int32

    # Numerically stable shift: channel max is the only remaining sublane (XLU) reduce
    # on the bf16/MXU path.
    m = jnp.max(x, axis=0, keepdims=True)              # (1, bhw)
    y = x - m                                          # (C, bhw), <= 0

    e = jnp.exp(y)                                     # EUP (bf16 on v6e/v7x fast path)

    # One-hot select of the target row (no dynamic gather on TPU).
    class_ids = jax.lax.broadcasted_iota(jnp.int32, (C, bhw), 0)
    ty = jnp.where(class_ids == tgt, y, jnp.zeros_like(y))

    if compute_dtype == jnp.bfloat16:
        # Offload both channel sums to the MXU (ones(1,C) @ (C,bhw)), freeing the XLU;
        # preferred_element_type gives f32 accumulation of the bf16 products.
        ones = jnp.ones((1, C), dtype=compute_dtype)
        sum_e = jnp.dot(ones, e, preferred_element_type=jnp.float32)    # (1, bhw) f32
        y_tgt = jnp.dot(ones, ty, preferred_element_type=jnp.float32)   # (1, bhw) f32
    else:
        # f32 path: exact sublane-reduction sums.
        sum_e = jnp.sum(e, axis=0, keepdims=True)                       # (1, bhw) f32
        y_tgt = jnp.sum(ty, axis=0, keepdims=True)                      # (1, bhw) f32

    # Per-pixel NLL: logsumexp(x) - x[tgt] = (log(sum_e) + m) - (y_tgt + m)
    #             = log(sum_e) - y_tgt  (the max cancels).
    loss = jnp.log(sum_e) - y_tgt                                       # (1, bhw) f32

    def _write(l):
        # Fully reduce in-kernel; the per-tile HBM write is a single 128-lane row,
        # negligible versus the logits stream.
        out_ref[...] = jnp.full(out_ref.shape, jnp.sum(l), dtype=out_ref.dtype)

    if HW % bhw != 0:
        t = pl.program_id(1)
        last = pl.num_programs(1) - 1

        @pl.when(t == last)
        def _masked():
            # Padded lanes of the final partial tile hold unspecified data (possibly
            # inf/nan); the where() confines them before the reduction.
            pix = t * bhw + jax.lax.broadcasted_iota(jnp.int32, (1, bhw), 1)
            _write(jnp.where(pix < HW, loss, 0.0))

        @pl.when(t != last)
        def _full():
            _write(loss)
    else:
        _write(loss)


def cross_entropy_loss_2d(logits_nchw, targets_nhw, *, block_hw=32768, compute_dtype=None):
    """Equivalent of CrossEntropyLoss2d().forward(inputs, targets).

    logits_nchw: float (N, C, H, W)
    targets_nhw: int   (N, H, W) with values in [0, C)
    returns: scalar float32 mean loss
    """
    N, C, H, W = logits_nchw.shape
    HW = H * W
    M = N * HW

    # ---- compute dtype: keep bf16 elementwise math on chips with a bf16 VPU/EUP ----
    if compute_dtype is None:
        if logits_nchw.dtype == jnp.bfloat16 and not _f32_only_vector_unit():
            compute_dtype = jnp.bfloat16
        else:
            compute_dtype = jnp.float32
    compute_dtype = jnp.dtype(compute_dtype)

    # ---- generation-aware VMEM budget (v7x: 64 MiB physical vs 128 MiB v5e/v6e) ----
    try:
        vmem_cap = int(pltpu.get_tpu_info().vmem_capacity_bytes)
    except Exception:
        vmem_cap = 64 * 1024 * 1024              # conservative (v7x-sized) fallback
    vmem_limit = min(vmem_cap // 2, 64 * 1024 * 1024)
    budget = (3 * vmem_limit) // 4               # headroom for Mosaic-internal scratch

    in_itemsize = jnp.dtype(logits_nchw.dtype).itemsize
    cdt_itemsize = compute_dtype.itemsize
    # Per-pixel VMEM bytes: double-buffered logits + targets tiles, plus the in-kernel
    # (C, bhw) temporaries (y, exp(y), masked y, int32 iota, bool mask) and a few rows.
    bytes_per_pixel = (
        2 * C * in_itemsize                      # logits tile, double buffered
        + 2 * 4                                  # int32 targets tile, double buffered
        + C * (3 * cdt_itemsize + 5)             # y, e, ty + iota + mask
        + 8 * 4                                  # m / sums / loss / pixel-iota rows
    )
    cap = max(128, (budget // bytes_per_pixel) // 128 * 128)

    # ---- pixel tile: lane-dense multiple of 128, as large as HW / budget allow ----
    bhw = min(_round_up(min(block_hw, HW), 128), max(HW // 128 * 128, 128), cap)
    T = pl.cdiv(HW, bhw)

    # Free reshapes (no data movement): channels stay where they are in HBM.
    logits3 = logits_nchw.reshape(N, C, HW)
    # TODO(synk): accept narrower (u8/i16) target dtypes end-to-end when C is small to
    #             shrink the target HBM stream; int32 keeps the kernel general here.
    targets3 = targets_nhw.reshape(N, 1, HW).astype(jnp.int32)

    partials = pl.pallas_call(
        functools.partial(_ce_kernel, C=C, bhw=bhw, HW=HW, compute_dtype=compute_dtype),
        out_shape=jax.ShapeDtypeStruct((N, T, 1, 128), jnp.float32),
        grid_spec=pltpu.PrefetchScalarGridSpec(
            num_scalar_prefetch=0,
            grid=(N, T),
            in_specs=[
                pl.BlockSpec((1, C, bhw), lambda n, t: (n, 0, t)),
                pl.BlockSpec((1, 1, bhw), lambda n, t: (n, 0, t)),
            ],
            out_specs=pl.BlockSpec((1, 1, 1, 128), lambda n, t: (n, t, 0, 0)),
        ),
        compiler_params=pltpu.CompilerParams(
            dimension_semantics=("parallel", "parallel"),
            vmem_limit_bytes=int(vmem_limit),
        ),
    )(logits3, targets3)

    # Each (n, t) block holds one scalar broadcast over 128 lanes; read lane 0.
    total = jnp.sum(partials[:, :, 0, 0])
    # size_average=True -> mean over all N*H*W pixels.
    return (total / jnp.float32(M)).astype(jnp.float32)


def _reference(logits_nchw, targets_nhw):
    # pure-JAX reference for sanity checking
    logp = jax.nn.log_softmax(logits_nchw.astype(jnp.float32), axis=1)
    logp = jnp.transpose(logp, (0, 2, 3, 1))                     # (N, H, W, C)
    picked = jnp.take_along_axis(
        logp, targets_nhw[..., None].astype(jnp.int32), axis=-1
    )[..., 0]
    return -jnp.mean(picked)


if __name__ == "__main__":
    key = jax.random.PRNGKey(0)
    k1, k2, k3, k4, k5, k6 = jax.random.split(key, 6)

    # Test A: nominal small shape (f32, single full tile per image).
    logits_a = jax.random.normal(k1, (2, 4, 16, 16), dtype=jnp.float32)
    targets_a = jax.random.randint(k2, (2, 16, 16), 0, 4, dtype=jnp.int32)
    out_a = jax.block_until_ready(cross_entropy_loss_2d(logits_a, targets_a))
    ref_a = jax.block_until_ready(_reference(logits_a, targets_a))
    assert jnp.allclose(out_a, ref_a, atol=1e-5, rtol=1e-5), (out_a, ref_a)

    # Test B: multi-tile with a masked partial final tile; N=1 exercises the
    # both-axes-parallel grid (f32 path).
    logits_b = jax.random.normal(k3, (1, 3, 20, 20), dtype=jnp.float32)
    targets_b = jax.random.randint(k4, (1, 20, 20), 0, 3, dtype=jnp.int32)
    out_b = jax.block_until_ready(cross_entropy_loss_2d(logits_b, targets_b))
    ref_b = jax.block_until_ready(_reference(logits_b, targets_b))
    assert jnp.allclose(out_b, ref_b, atol=1e-5, rtol=1e-5), (out_b, ref_b)

    # Test C: bf16 inputs with a forced small tile -> multi-tile + masked last tile;
    # exercises the bf16 + MXU channel-sum fast path on chips with a bf16 VPU/EUP.
    logits_c = jax.random.normal(k5, (2, 8, 20, 20), dtype=jnp.float32).astype(jnp.bfloat16)
    targets_c = jax.random.randint(k6, (2, 20, 20), 0, 8, dtype=jnp.int32)
    out_c = jax.block_until_ready(cross_entropy_loss_2d(logits_c, targets_c, block_hw=256))
    ref_c = jax.block_until_ready(_reference(logits_c, targets_c))
    assert jnp.allclose(out_c, ref_c, atol=5e-2, rtol=5e-2), (out_c, ref_c)

    print("KERNEL_OK")
</pallas_src>

<mosaic_0001>
module attributes {stable_mosaic.version = 11 : i64} {
  func.func @_ce_kernel(%arg0: i32, %arg1: i32, %arg2: memref<1x4x256xf32, #tpu.memory_space<vmem>>, %arg3: memref<1x1x256xi32, #tpu.memory_space<vmem>>, %arg4: memref<1x1x1x128xf32, #tpu.memory_space<vmem>>) attributes {dimension_semantics = [#tpu.dimension_semantics<parallel>, #tpu.dimension_semantics<parallel>], iteration_bounds = array<i64: 2, 1>, scalar_prefetch = 0 : i64, scratch_operands = 0 : i64, tpu.core_type = #tpu.core_type<tc>, window_params = [{transform_indices = @transform_0, window_bounds = array<i64: 1, 4, 256>}, {transform_indices = @transform_1, window_bounds = array<i64: 1, 1, 256>}, {transform_indices = @transform_2, window_bounds = array<i64: 1, 1, 1, 128>}]} {
    %c0 = arith.constant 0 : index
    %c0_0 = arith.constant 0 : index
    %c0_1 = arith.constant 0 : index
    %0 = vector.load %arg2[%c0, %c0_0, %c0_1] : memref<1x4x256xf32, #tpu.memory_space<vmem>>, vector<1x4x256xf32>
    %1 = vector.shape_cast %0 : vector<1x4x256xf32> to vector<4x256xf32>
    %c0_2 = arith.constant 0 : index
    %c0_3 = arith.constant 0 : index
    %c0_4 = arith.constant 0 : index
    %2 = vector.load %arg3[%c0_2, %c0_3, %c0_4] : memref<1x1x256xi32, #tpu.memory_space<vmem>>, vector<1x1x256xi32>
    %3 = vector.shape_cast %2 : vector<1x1x256xi32> to vector<1x256xi32>
    %cst = arith.constant dense<0xFF800000> : vector<256xf32>
    %4 = vector.multi_reduction <maximumf>, %1, %cst [0] : vector<4x256xf32> to vector<256xf32>
    %5 = vector.shape_cast %4 : vector<256xf32> to vector<1x256xf32>
    %6 = vector.broadcast %5 : vector<1x256xf32> to vector<4x256xf32>
    %7 = arith.subf %1, %6 : vector<4x256xf32>
    %8 = math.exp %7 : vector<4x256xf32>
    %9 = tpu.iota {dimensions = array<i32: 0>} : vector<4x256xi32>
    %10 = vector.broadcast %3 : vector<1x256xi32> to vector<4x256xi32>
    %11 = arith.cmpi eq, %9, %10 : vector<4x256xi32>
    %cst_5 = arith.constant 0.000000e+00 : f32
    %12 = vector.broadcast %cst_5 : f32 to vector<4x256xf32>
    %13 = arith.select %11, %7, %12 : vector<4x256xi1>, vector<4x256xf32>
    %cst_6 = arith.constant dense<0.000000e+00> : vector<256xf32>
    %14 = vector.multi_reduction <add>, %8, %cst_6 [0] : vector<4x256xf32> to vector<256xf32>
    %15 = vector.shape_cast %14 : vector<256xf32> to vector<1x256xf32>
    %cst_7 = arith.constant dense<0.000000e+00> : vector<256xf32>
    %16 = vector.multi_reduction <add>, %13, %cst_7 [0] : vector<4x256xf32> to vector<256xf32>
    %17 = vector.shape_cast %16 : vector<256xf32> to vector<1x256xf32>
    %18 = math.log %15 : vector<1x256xf32>
    %19 = arith.subf %18, %17 : vector<1x256xf32>
    %20 = vector.shape_cast %19 : vector<1x256xf32> to vector<1x1x256xf32>
    %cst_8 = arith.constant dense<0.000000e+00> : vector<1xf32>
    %21 = vector.multi_reduction <add>, %20, %cst_8 [1, 2] : vector<1x1x256xf32> to vector<1xf32>
    %22 = vector.shape_cast %21 : vector<1xf32> to vector<1x1x1xf32>
    %23 = vector.extract %22[0, 0, 0] : f32 from vector<1x1x1xf32>
    %24 = vector.broadcast %23 : f32 to vector<1x1x1x128xf32>
    %c0_9 = arith.constant 0 : index
    %c0_10 = arith.constant 0 : index
    %c0_11 = arith.constant 0 : index
    %c0_12 = arith.constant 0 : index
    %25 = vector.load %arg4[%c0_9, %c0_10, %c0_11, %c0_12] : memref<1x1x1x128xf32, #tpu.memory_space<vmem>>, vector<1x1x1x128xf32>
    tpu.vector_store %arg4[%c0_9, %c0_10, %c0_11, %c0_12], %24 {strides = array<i32>} : memref<1x1x1x128xf32, #tpu.memory_space<vmem>>, vector<1x1x1x128xf32>,
    return
  }
  func.func @transform_0(%arg0: i32, %arg1: i32) -> (i32, i32, i32) {
    %c0_i32 = arith.constant 0 : i32
    %c0_i32_0 = arith.constant 0 : i32
    return %arg0, %c0_i32, %arg1 : i32, i32, i32
  }
  func.func @transform_1(%arg0: i32, %arg1: i32) -> (i32, i32, i32) {
    %c0_i32 = arith.constant 0 : i32
    %c0_i32_0 = arith.constant 0 : i32
    return %arg0, %c0_i32, %arg1 : i32, i32, i32
  }
  func.func @transform_2(%arg0: i32, %arg1: i32) -> (i32, i32, i32, i32) {
    %c0_i32 = arith.constant 0 : i32
    %c0_i32_0 = arith.constant 0 : i32
    %c0_i32_1 = arith.constant 0 : i32
    return %arg0, %arg1, %c0_i32, %c0_i32_0 : i32, i32, i32, i32
  }
}

</mosaic_0001>

<llo_original>
// kernel: tpu_custom_call.1
$region0: #{tpu_custom_call.1}
  #allocation0 [shape = 'u32[]', space=smem, size = 0x4, offset = 0x4, fixed_abs, tag = 'smem constant byte address 0x4 - core index']
  #allocation1 [shape = 'u32[72,128]{1,0:T(1,128)}', space=vmem, size = 0x9000, scoped, tag = 'internal scratch']
  %s0 = inlined_call_operand.hbm [shape: f32[2,4,256], index: 0, kind: input, shape index: {}]
  %s1 = inlined_call_operand.hbm [shape: s32[2,1,256], index: 1, kind: input, shape index: {}]
  %s2 = inlined_call_operand.hbm [shape: f32[2,1,1,128], index: 2, kind: output, shape index: {}]
  %s3 = sld [smem:[#allocation0]]
  $region49: #{tpu_custom_call.1} parent=0
    _
  %s5 = ssub.s32 1, %s3
  %s6 = scalar_select 0, %s5, %s3
  $region1: #{tpu_custom_call.1} parent=0
    #allocation2 [shape = 'u8[8192]{0}', space=vmem, size = 0x2000, scoped, tag = 'input window, operand 0']
    #allocation3 [shape = 's32[2]{0}', space=sflag, size = 0x8, scoped, tag = 'scoped memory for tpu_custom_call.1']
    #allocation4 [shape = 's32[2]{0}', space=sflag, size = 0x8, scoped, tag = 'scoped memory for tpu_custom_call.1']
    #allocation5 [shape = 'u8[2048]{0}', space=vmem, size = 0x800, scoped, tag = 'input window, operand 1']
    #allocation6 [shape = 's32[2]{0}', space=sflag, size = 0x8, scoped, tag = 'scoped memory for tpu_custom_call.1']
    #allocation7 [shape = 'u8[1024]{0}', space=vmem, size = 0x400, scoped, tag = 'output window, operand 0']
    %7 = vsyncpa [#allocation3], 0
    %s8 = scalar_lea.sflag [#allocation3], 1
    %9 = vsyncpa %s8, 0
    %10 = vsyncpa [#allocation6], 0
    %s11 = scalar_lea.sflag [#allocation6], 1
    %12 = vsyncpa %s11, 0
    %13 = vsyncpa [#allocation4], 0
    %s14 = scalar_lea.sflag [#allocation4], 1
    %15 = vsyncpa %s14, 0
    loop: start=0, step=1, limit=4
    $region2: #{tpu_custom_call.1} parent=1 // loop_pre_header
      _
    $region3: #{tpu_custom_call.1} parent=1 // loop_header
      %s17 = sphi 0, %s21
      %p18 = scmp.ge.s32.totalorder %s17, 4
      %s24 = sphi 0, %s36
      %s25 = sphi 0, %s32
      %s26 = sphi 0, %s24
      %s27 = sphi 0, %s25
      %s28 = sphi 0, %s26
      %s29 = sphi 0, %s27
      %s41 = sphi 0, %s43
      %s44 = sphi 0, %s41
      %s45 = sphi 0, %s44
      %s61 = sphi 0, %s45
      %s69 = sphi 0, %s71
      %s72 = sphi 0, %s69
      %s73 = sphi 0, %s72
      %s89 = sphi 0, %s73
      %s97 = sphi 0, %s99
      %s100 = sphi 0, %s97
      %s101 = sphi 0, %s100
      %s117 = sphi 0, %s101
    $region4: #{tpu_custom_call.1} parent=1 // loop_header_branch
      %20 = sbr.rel (%p18) target = $region8
    $region5: #{tpu_custom_call.1} parent=1 // loop_body
      %s22 = ssub.s32 %s17, 1
      %s23 = ssub.s32 %s17, 2
      %s30 = sadd.s32 1, %s25
      %p31 = scmp.ge.s32.totalorder %s30, 1
      %s32 = scalar_select %p31, 0, %s30
      %s33 = sadd.s32 1, %s24
      %s34 = scalar_select %p31, %s33, %s24
      %p35 = scmp.ge.s32.totalorder %s34, 2
      %s36 = scalar_select %p35, 0, %s34
      %s37 = ssub.s32 %s24, %s36
      %s38 = ssub.s32 %s25, %s32
      %s39 = sor.u32 %s37, %s38
      %p40 = scmp.eq.s32.totalorder %s39, 0
      %s42 = sadd.s32 %s41, 1
      %s43 = scalar_select %p40, %s41, %s42
      %p46 = pneg %p40
      %p47 = scmp.eq.s32.totalorder %s17, 1
      %p48 = por %p46, %p47
      %p49 = scmp.ne.s32.totalorder %s41, %s44
      %p50 = scmp.eq.s32.totalorder %s17, 0
      %p51 = por %p49, %p50
      %p52 = scmp.ne.s32.totalorder %s41, %s44
      %p53 = scmp.eq.s32.totalorder %s22, 1
      %p54 = por %p52, %p53
      %p55 = scmp.ne.s32.totalorder %s44, %s45
      %p56 = scmp.eq.s32.totalorder %s22, 0
      %p57 = por %p55, %p56
      %p58 = scmp.ne.s32.totalorder %s44, %s45
      %p59 = scmp.eq.s32.totalorder %s23, 1
      %p60 = por %p58, %p59
      %p62 = scmp.ne.s32.totalorder %s45, %s61
      %p63 = scmp.eq.s32.totalorder %s23, 0
      %p64 = por %p62, %p63
      %s65 = ssub.s32 %s24, %s36
      %s66 = ssub.s32 %s25, %s32
      %s67 = sor.u32 %s65, %s66
      %p68 = scmp.eq.s32.totalorder %s67, 0
      %s70 = sadd.s32 %s69, 1
      %s71 = scalar_select %p68, %s69, %s70
      %p74 = pneg %p68
      %p75 = scmp.eq.s32.totalorder %s17, 1
      %p76 = por %p74, %p75
      %p77 = scmp.ne.s32.totalorder %s69, %s72
      %p78 = scmp.eq.s32.totalorder %s17, 0
      %p79 = por %p77, %p78
      %p80 = scmp.ne.s32.totalorder %s69, %s72
      %p81 = scmp.eq.s32.totalorder %s22, 1
      %p82 = por %p80, %p81
      %p83 = scmp.ne.s32.totalorder %s72, %s73
      %p84 = scmp.eq.s32.totalorder %s22, 0
      %p85 = por %p83, %p84
      %p86 = scmp.ne.s32.totalorder %s72, %s73
      %p87 = scmp.eq.s32.totalorder %s23, 1
      %p88 = por %p86, %p87
      %p90 = scmp.ne.s32.totalorder %s73, %s89
      %p91 = scmp.eq.s32.totalorder %s23, 0
      %p92 = por %p90, %p91
      %s93 = ssub.s32 %s24, %s36
      %s94 = ssub.s32 %s25, %s32
      %s95 = sor.u32 %s93, %s94
      %p96 = scmp.eq.s32.totalorder %s95, 0
      %s98 = sadd.s32 %s97, 1
      %s99 = scalar_select %p96, %s97, %s98
      %p102 = pneg %p96
      %p103 = scmp.eq.s32.totalorder %s17, 1
      %p104 = por %p102, %p103
      %p105 = scmp.ne.s32.totalorder %s97, %s100
      %p106 = scmp.eq.s32.totalorder %s17, 0
      %p107 = por %p105, %p106
      %p108 = scmp.ne.s32.totalorder %s97, %s100
      %p109 = scmp.eq.s32.totalorder %s22, 1
      %p110 = por %p108, %p109
      %p111 = scmp.ne.s32.totalorder %s100, %s101
      %p112 = scmp.eq.s32.totalorder %s22, 0
      %p113 = por %p111, %p112
      %p114 = scmp.ne.s32.totalorder %s100, %s101
      %p115 = scmp.eq.s32.totalorder %s23, 1
      %p116 = por %p114, %p115
      %p118 = scmp.ne.s32.totalorder %s101, %s117
      %p119 = scmp.eq.s32.totalorder %s23, 0
      %p120 = por %p118, %p119
      %p121 = scmp.le.s32.totalorder 1, %s17
      %p122 = scmp.lt.s32.totalorder %s17, 3
      %p123 = pnand %p121, %p122
      %p124 = pneg %p123
      // Predicated region
      $region9: #{tpu_custom_call.1} parent=5 // pred_check
        _
      $region10: #{tpu_custom_call.1} parent=5 // pred_check_branch
        %126 = sbr.rel (%p123) target = $region12
      $region11: #{tpu_custom_call.1} parent=5 // pred_region
        %s127 = ssub.s32 %s17, 1
      $region12: #{tpu_custom_call.1} parent=5 // pred_fallthru
        _
      %p128 = scmp.lt.s32.totalorder %s17, 2
      // Predicated region
      $region13: #{tpu_custom_call.1} parent=5 // pred_check
        %p129 = pneg %p128
      $region14: #{tpu_custom_call.1} parent=5 // pred_check_branch
        %131 = sbr.rel (%p129) target = $region16
      $region15: #{tpu_custom_call.1} parent=5 // pred_region
        // Predicated region
        $region17: #{tpu_custom_call.1} parent=15 // pred_check
          %p132 = pneg %p51
        $region18: #{tpu_custom_call.1} parent=15 // pred_check_branch
          %134 = sbr.rel (%p132) target = $region20
        $region19: #{tpu_custom_call.1} parent=15 // pred_region
          %s135 = sand.u32 %s41, 1
          %s136 = scalar_lea.sflag [#allocation3], %s135
          %s137 = sand.u32 %s41, 1
          %s138 = smul.addr %s137, 8
          %s139 = scalar_lea.vmem [#allocation2], %s138
          %s140 = smul.u32 2, %s25
          %142 = vsyncadd %s136, 0
          %s143 = smul.addr %s24, 2
          %s144 = sadd.s32 %s140, %s143
          %s145 = smul.addr %s144, 4
          %s146 = scalar_lea.hbm %s0, %s145
          %s148 = sshll.u32 %s146, 4
          %s149 = int_to_ptr.hbm [resolvable:$true] %s148
          %s150 = sshll.u32 %s139, 4
          %s151 = int_to_ptr.vmem [resolvable:$true] %s150
          %153 = dma.hbm_to_vmem [thread:$0]  %s149, 128, %s151, %s136
        $region20: #{tpu_custom_call.1} parent=15 // pred_fallthru
          _
        // Predicated region
        $region21: #{tpu_custom_call.1} parent=15 // pred_check
          %p154 = pneg %p79
        $region22: #{tpu_custom_call.1} parent=15 // pred_check_branch
          %156 = sbr.rel (%p154) target = $region24
        $region23: #{tpu_custom_call.1} parent=15 // pred_region
          %s157 = sand.u32 %s69, 1
          %s158 = scalar_lea.sflag [#allocation6], %s157
          %s159 = sand.u32 %s69, 1
          %s160 = smul.addr %s159, 2
          %s161 = scalar_lea.vmem [#allocation5], %s160
          %s162 = smul.u32 2, %s25
          %164 = vsyncadd %s158, 0
          %s165 = smul.addr %s24, 2
          %s166 = sadd.s32 %s162, %s165
          %s167 = scalar_lea.hbm %s1, %s166
          %s169 = sshll.u32 %s167, 4
          %s170 = int_to_ptr.hbm [resolvable:$true] %s169
          %s171 = sshll.u32 %s161, 4
          %s172 = int_to_ptr.vmem [resolvable:$true] %s171
          %174 = dma.hbm_to_vmem [thread:$0]  %s170, 32, %s172, %s158
        $region24: #{tpu_custom_call.1} parent=15 // pred_fallthru
          _
      $region16: #{tpu_custom_call.1} parent=5 // pred_fallthru
        _
      %p175 = scmp.le.s32.totalorder 1, %s17
      %p176 = scmp.lt.s32.totalorder %s17, 3
      %p177 = pnand %p175, %p176
      %p178 = pneg %p177
      // Predicated region
      $region25: #{tpu_custom_call.1} parent=5 // pred_check
        _
      $region26: #{tpu_custom_call.1} parent=5 // pred_check_branch
        %180 = sbr.rel (%p177) target = $region28
      $region27: #{tpu_custom_call.1} parent=5 // pred_region
        %s181 = ssub.s32 %s17, 1
        %s182 = sand.u32 %s44, 1
        %s183 = scalar_lea.sflag [#allocation3], %s182
        %s184 = sand.u32 %s44, 1
        %s185 = smul.addr %s184, 8
        %s186 = scalar_lea.vmem [#allocation2], %s185
        // Predicated region
        $region29: #{tpu_custom_call.1} parent=27 // pred_check
          %p187 = pneg %p57
        $region30: #{tpu_custom_call.1} parent=27 // pred_check_branch
          %189 = sbr.rel (%p187) target = $region32
        $region31: #{tpu_custom_call.1} parent=27 // pred_region
          %191 = dma.done %s183, 128
        $region32: #{tpu_custom_call.1} parent=27 // pred_fallthru
          _
        %s192 = sand.u32 %s72, 1
        %s193 = scalar_lea.sflag [#allocation6], %s192
        %s194 = sand.u32 %s72, 1
        %s195 = smul.addr %s194, 2
        %s196 = scalar_lea.vmem [#allocation5], %s195
        // Predicated region
        $region33: #{tpu_custom_call.1} parent=27 // pred_check
          %p197 = pneg %p85
        $region34: #{tpu_custom_call.1} parent=27 // pred_check_branch
          %199 = sbr.rel (%p197) target = $region36
        $region35: #{tpu_custom_call.1} parent=27 // pred_region
          %201 = dma.done %s193, 32
        $region36: #{tpu_custom_call.1} parent=27 // pred_fallthru
          _
        %s202 = sand.u32 %s44, 1
        %s203 = scalar_lea.sflag [#allocation3], %s202
        %s204 = sand.u32 %s44, 1
        %s205 = smul.addr %s204, 8
        %s206 = scalar_lea.vmem [#allocation2], %s205
        %p207 = pneg %p57
        %p208 = pneg %p54
        %s209 = sand.u32 %s72, 1
        %s210 = scalar_lea.sflag [#allocation6], %s209
        %s211 = sand.u32 %s72, 1
        %s212 = smul.addr %s211, 2
        %s213 = scalar_lea.vmem [#allocation5], %s212
        %p214 = pneg %p85
        %p215 = pneg %p82
        %p216 = pneg %p113
        %p217 = pneg %p110
        %s218 = sand.u32 %s100, 1
        %s219 = scalar_lea.sflag [#allocation4], %s218
        %s220 = sand.u32 %s100, 1
        %s221 = scalar_lea.vmem [#allocation7], %s220
        %s222 = smul.u32 2, %s27
        %s223 = smul.u32 2, %s27
        %v224 = vld [vmem:[%s186] sm:$0xff]
        %v225 = vld [vmem:[%s196] sm:$0x3]
        %227 = vst [vmem:[#allocation1] ss:$2 sm:$0xff] %v224
        %v228 = vld.sshfl [vmem:[#allocation1] sm:$0xff pattern:$0x75316420]
        %v229 = vld.sshfl [vmem:[#allocation1 + $0x8] sm:$0xff pattern:$0x75316420]
        %vm232 = vcmask 1043456
        %v233 = vsel %vm232, %v228, -inf
        %v234 = vrot.slane %v233, 4
        %v235 = vmax.f32 %v233, %v234
        %v236 = vrot.slane %v235, 2
        %v237 = vmax.f32 %v235, %v236
        %v238 = vrot.slane %v237, 1
        %v239 = vmax.f32 %v237, %v238
        %v240 = vsel %vm232, %v229, -inf
        %v241 = vrot.slane %v240, 4
        %v242 = vmax.f32 %v240, %v241
        %v243 = vrot.slane %v242, 2
        %v244 = vmax.f32 %v242, %v243
        %v245 = vrot.slane %v244, 1
        %v246 = vmax.f32 %v244, %v245
        %v249 = vrot.slane %v246, 4
        %v250 = vsel %vm232, %v239, %v249
        %v252 = vsub.f32 %v224, %v250
        %v253 = vmul.f32 %v252, 1.442695
        %v254 = vpow.pop %v253
        %v255 = vlaneseq
        %v256 = vshrl.u32 %v255, 7
        %v257 = vperm.slane %v225, 0
        %v258 = vperm.slane %v225, 1
        %vm259 = vcmp.eq.s32.totalorder %v256, %v257
        %vm260 = vcmp.eq.s32.totalorder %v256, %v258
        %262 = vst [vmem:[#allocation1] ss:$2 sm:$0xff] %v252
        %v263 = vld.sshfl [vmem:[#allocation1] sm:$0xff pattern:$0x75316420]
        %v264 = vld.sshfl [vmem:[#allocation1 + $0x8] sm:$0xff pattern:$0x75316420]
        %v267 = vsel %vm259, %v263, 0.0
        %v268 = vsel %vm260, %v264, 0.0
        %270 = vst [vmem:[#allocation1] ss:$2 sm:$0xff] %v254
        %v271 = vld.sshfl [vmem:[#allocation1] sm:$0xff pattern:$0x75316420]
        %v272 = vld.sshfl [vmem:[#allocation1 + $0x8] sm:$0xff pattern:$0x75316420]
        %v275 = vsel %vm232, %v271, 0.0
        %v276 = vrot.slane %v275, 4
        %v277 = vadd.f32 %v275, %v276
        %v278 = vrot.slane %v277, 2
        %v279 = vadd.f32 %v277, %v278
        %v280 = vrot.slane %v279, 1
        %v281 = vadd.f32 %v279, %v280
        %v282 = vsel %vm232, %v272, 0.0
        %v283 = vrot.slane %v282, 4
        %v284 = vadd.f32 %v282, %v283
        %v285 = vrot.slane %v284, 2
        %v286 = vadd.f32 %v284, %v285
        %v287 = vrot.slane %v286, 1
        %v288 = vadd.f32 %v286, %v287
        %v289 = vsel %vm232, %v267, 0.0
        %v290 = vrot.slane %v289, 4
        %v291 = vadd.f32 %v289, %v290
        %v292 = vrot.slane %v291, 2
        %v293 = vadd.f32 %v291, %v292
        %v294 = vrot.slane %v293, 1
        %v295 = vadd.f32 %v293, %v294
        %v296 = vsel %vm232, %v268, 0.0
        %v297 = vrot.slane %v296, 4
        %v298 = vadd.f32 %v296, %v297
        %v299 = vrot.slane %v298, 2
        %v300 = vadd.f32 %v298, %v299
        %v301 = vrot.slane %v300, 1
        %v302 = vadd.f32 %v300, %v301
        %v303 = vlog2.pop %v281
        %v304 = vmul.f32 %v303, 0.6931472
        %v305 = vlog2.pop %v288
        %v306 = vmul.f32 %v305, 0.6931472
        %v307 = vsub.f32 %v304, %v295
        %v308 = vsub.f32 %v306, %v302
        %vm309 = vcmask 1040384
        %v310 = vsel %vm309, %v307, 0.0
        %v311 = vsel %vm309, %v308, 0.0
        %v312 = vadd.f32 %v310, %v311
        %313 = vadd.xlane.f32.xlu0 %v312
        %v314 = vpop.xlane.xlu0 %313
        %v315 = vrot.slane %v314, 4
        %v316 = vadd.f32 %v314, %v315
        %v317 = vrot.slane %v316, 2
        %v318 = vadd.f32 %v316, %v317
        %v319 = vrot.slane %v318, 1
        %v320 = vadd.f32 %v318, %v319
        %s321 = vtos %v320
        %v322 = vstv %s321
        %323 = vst [vmem:[%s221] sm:$0x1] %v322
        %s324 = sand.u32 %s100, 1
        %s325 = scalar_lea.sflag [#allocation4], %s324
        %s326 = sand.u32 %s100, 1
        %s327 = scalar_lea.vmem [#allocation7], %s326
        // Predicated region
        $region37: #{tpu_custom_call.1} parent=27 // pred_check
          %p328 = pneg %p110
        $region38: #{tpu_custom_call.1} parent=27 // pred_check_branch
          %330 = sbr.rel (%p328) target = $region40
        $region39: #{tpu_custom_call.1} parent=27 // pred_region
          %332 = vsyncadd %s325, 0
          %s333 = sadd.s32 %s27, %s26
          %s334 = scalar_lea.hbm %s2, %s333
          %s336 = sshll.u32 %s327, 4
          %s337 = int_to_ptr.vmem [resolvable:$true] %s336
          %s338 = sshll.u32 %s334, 4
          %s339 = int_to_ptr.hbm [resolvable:$true] %s338
          %341 = dma.vmem_to_hbm [thread:$0]  %s337, 16, %s339, %s325
        $region40: #{tpu_custom_call.1} parent=27 // pred_fallthru
          _
      $region28: #{tpu_custom_call.1} parent=5 // pred_fallthru
        _
      %p342 = scmp.le.s32.totalorder 2, %s17
      // Predicated region
      $region41: #{tpu_custom_call.1} parent=5 // pred_check
        %p343 = pneg %p342
      $region42: #{tpu_custom_call.1} parent=5 // pred_check_branch
        %345 = sbr.rel (%p343) target = $region44
      $region43: #{tpu_custom_call.1} parent=5 // pred_region
        %s346 = ssub.s32 %s17, 2
        // Predicated region
        $region45: #{tpu_custom_call.1} parent=43 // pred_check
          %p347 = pneg %p116
        $region46: #{tpu_custom_call.1} parent=43 // pred_check_branch
          %349 = sbr.rel (%p347) target = $region48
        $region47: #{tpu_custom_call.1} parent=43 // pred_region
          %s350 = sand.u32 %s101, 1
          %s351 = scalar_lea.sflag [#allocation4], %s350
          %s352 = sand.u32 %s101, 1
          %s353 = scalar_lea.vmem [#allocation7], %s352
          %355 = dma.done %s351, 16
        $region48: #{tpu_custom_call.1} parent=43 // pred_fallthru
          _
      $region44: #{tpu_custom_call.1} parent=5 // pred_fallthru
        _
    $region6: #{tpu_custom_call.1} parent=1 // loop_footer
      %s21 = sadd.s32 1, %s17
    $region7: #{tpu_custom_call.1} parent=1 // loop_footer_branch
      %16 = sbr.rel target = $region3
    $region8: #{tpu_custom_call.1} parent=1 // loop_exit
      _
    %356 = vsyncpa [#allocation3], 1
    %s357 = scalar_lea.sflag [#allocation3], 1
    %358 = vsyncpa %s357, 1
    %359 = vsyncpa [#allocation6], 1
    %s360 = scalar_lea.sflag [#allocation6], 1
    %361 = vsyncpa %s360, 1
    %362 = vsyncpa [#allocation4], 1
    %s363 = scalar_lea.sflag [#allocation4], 1
    %364 = vsyncpa %s363, 1

</llo_original>
